<compile_context>
chip_gen: v5e
topology: v5e:2x2
jax: 0.10.0
libtpu: 0.0.40
codegen_flags: <defaults>
</compile_context>

<pallas_src>
import functools

import jax
import jax.numpy as jnp
from jax.experimental import pallas as pl
from jax.experimental.pallas import tpu as pltpu


def _head_kernel(x_ref, w_ref, b_ref, o_ref):
    # x_ref: [TM, K]      bf16 activations (last patch, flattened)
    # w_ref: [K, N_pad]   bf16 weight (resident: constant index_map)
    # b_ref: [1, N_pad]   f32 bias
    # o_ref: [TM, N_pad]  f32 output
    acc = jnp.dot(x_ref[...], w_ref[...], preferred_element_type=jnp.float32)
    o_ref[...] = (acc + b_ref[...]).astype(o_ref.dtype)


def prepare_head_params(weight, bias, param_dtype=jnp.bfloat16):
    """One-time parameter prep (do NOT call per forward).

    weight: [n_classes, K] with K = nvars * d_model  (PyTorch nn.Linear layout)
    bias:   [n_classes]
    Returns (w2 [K, N_pad] in param_dtype, b2 [1, N_pad] f32).
    """
    n_classes, k = weight.shape
    n_pad = ((n_classes + 127) // 128) * 128          # lane-dense output width
    w2 = jnp.pad(weight.T, ((0, 0), (0, n_pad - n_classes))).astype(param_dtype)
    b2 = jnp.pad(bias.astype(jnp.float32), (0, n_pad - n_classes)).reshape(1, n_pad)
    return w2, b2


def _choose_tm(bs, k, n_pad):
    """Batch tile size from a VMEM budget (conservative across v5e/v6e/v7x)."""
    budget = 8 * 1024 * 1024
    # Per-step VMEM that scales with tm: double-buffered bf16 x block +
    # double-buffered f32 out block (weight/bias are tm-independent, ~resident).
    per_row = 2 * (k * 2) + 2 * (n_pad * 4)
    tm = budget // max(per_row, 1)
    tm = min(tm, 512)
    tm = max(8, (tm // 8) * 8)                        # sublane-aligned
    bs8 = ((bs + 7) // 8) * 8
    tm = min(tm, bs8)
    # v7x megacore: ensure >= 2 batch tiles when the batch is big enough.
    if bs8 >= 16 and tm > bs8 // 2:
        tm = max(8, ((bs8 // 2) // 8) * 8)
    return tm


@functools.partial(jax.jit, static_argnames=("n_classes",))
def classification_head_forward(x, w2, b2, *, n_classes):
    """
    x:  [bs, nvars, d_model, num_patch]
    w2: [K, N_pad]   (prepared once via prepare_head_params, K = nvars*d_model)
    b2: [1, N_pad]   (f32, prepared once)
    returns [bs, n_classes] in float32
    """
    bs, nvars, d_model, num_patch = x.shape
    k = nvars * d_model
    n_pad = w2.shape[-1]

    # Fused in one XLA op: last-patch gather + flatten + bf16 cast.
    # (Kernel never sees the num_patch axis.)
    x_flat = x[:, :, :, -1].reshape(bs, k).astype(w2.dtype)

    # Dropout is identity at inference.
    # TODO(synk): training-mode dropout would go here (pltpu PRNG in-kernel).

    tm = _choose_tm(bs, k, n_pad)
    n_tiles = -(-bs // tm)                            # ceil
    bs_pad = n_tiles * tm
    if bs_pad != bs:
        x_flat = jnp.pad(x_flat, ((0, bs_pad - bs), (0, 0)))

    out_pad = pl.pallas_call(
        _head_kernel,
        out_shape=jax.ShapeDtypeStruct((bs_pad, n_pad), jnp.float32),
        grid_spec=pltpu.PrefetchScalarGridSpec(
            num_scalar_prefetch=0,
            grid=(n_tiles,),
            in_specs=[
                # Per-tile activations: [tm, K], K is the full (fused nvars) axis.
                pl.BlockSpec((tm, k), lambda i: (i, 0)),
                # Whole weight, constant index_map -> truly VMEM-resident.
                pl.BlockSpec((k, n_pad), lambda i: (0, 0)),
                pl.BlockSpec((1, n_pad), lambda i: (0, 0)),
            ],
            out_specs=pl.BlockSpec((tm, n_pad), lambda i: (i, 0)),
        ),
        compiler_params=pltpu.CompilerParams(
            dimension_semantics=("parallel",),
            vmem_limit_bytes=32 * 1024 * 1024,
        ),
    )(x_flat, w2, b2)

    # Drop batch padding and the lane padding on the class dim.
    return out_pad[:bs, :n_classes]


if __name__ == "__main__":
    # Small shapes consistent with the module's forward.
    bs, nvars, d_model, num_patch = 2, 4, 32, 8
    n_classes = 3
    k = nvars * d_model

    key = jax.random.PRNGKey(0)
    kx, kw, kb = jax.random.split(key, 3)

    x = jax.random.normal(kx, (bs, nvars, d_model, num_patch), dtype=jnp.float32)

    # PyTorch-Linear-like deterministic init.
    bound = 1.0 / (k ** 0.5)
    weight = jax.random.uniform(kw, (n_classes, k), jnp.float32, -bound, bound)
    bias = jax.random.uniform(kb, (n_classes,), jnp.float32, -bound, bound)

    # One-time parameter preparation (transpose / pad / bf16 cast).
    w2, b2 = prepare_head_params(weight, bias, jnp.bfloat16)

    y = classification_head_forward(x, w2, b2, n_classes=n_classes)
    y = jax.block_until_ready(y)

    # Reference with the same bf16 weight/activation quantization, f32 accum.
    x_flat = x[:, :, :, -1].reshape(bs, k)
    x_q = x_flat.astype(jnp.bfloat16).astype(jnp.float32)
    w_q = weight.astype(jnp.bfloat16).astype(jnp.float32)
    y_ref = x_q @ w_q.T + bias

    assert y.shape == (bs, n_classes)
    assert jnp.allclose(y, y_ref, atol=2e-3, rtol=2e-3), (y, y_ref)

    print("KERNEL_OK")
</pallas_src>

<mosaic_0001>
module attributes {stable_mosaic.version = 11 : i64} {
  func.func @_head_kernel(%arg0: i32, %arg1: memref<8x128xbf16, #tpu.memory_space<vmem>>, %arg2: memref<128x128xbf16, #tpu.memory_space<vmem>>, %arg3: memref<1x128xf32, #tpu.memory_space<vmem>>, %arg4: memref<8x128xf32, #tpu.memory_space<vmem>>) attributes {dimension_semantics = [#tpu.dimension_semantics<parallel>], iteration_bounds = array<i64: 1>, scalar_prefetch = 0 : i64, scratch_operands = 0 : i64, tpu.core_type = #tpu.core_type<tc>, window_params = [{transform_indices = @transform_0, window_bounds = array<i64: 8, 128>}, {pipeline_mode = #tpu.pipeline_mode<synchronous>, transform_indices = @transform_1, window_bounds = array<i64: 128, 128>}, {pipeline_mode = #tpu.pipeline_mode<synchronous>, transform_indices = @transform_2, window_bounds = array<i64: 1, 128>}, {transform_indices = @transform_3, window_bounds = array<i64: 8, 128>}]} {
    %c0 = arith.constant 0 : index
    %c0_0 = arith.constant 0 : index
    %0 = vector.load %arg1[%c0, %c0_0] : memref<8x128xbf16, #tpu.memory_space<vmem>>, vector<8x128xbf16>
    %c0_1 = arith.constant 0 : index
    %c0_2 = arith.constant 0 : index
    %1 = vector.load %arg2[%c0_1, %c0_2] : memref<128x128xbf16, #tpu.memory_space<vmem>>, vector<128x128xbf16>
    %cst = arith.constant dense<0.000000e+00> : vector<8x128xf32>
    %2 = tpu.matmul %0, %1, %cst {dimension_numbers = #tpu.dot_dimension_numbers<[1], [0], [0], [1], [0, 0, 1, 1], [], []>} : vector<8x128xbf16>, vector<128x128xbf16>, vector<8x128xf32> -> vector<8x128xf32>
    %c0_3 = arith.constant 0 : index
    %c0_4 = arith.constant 0 : index
    %3 = vector.load %arg3[%c0_3, %c0_4] : memref<1x128xf32, #tpu.memory_space<vmem>>, vector<1x128xf32>
    %4 = vector.broadcast %3 : vector<1x128xf32> to vector<8x128xf32>
    %5 = arith.addf %2, %4 : vector<8x128xf32>
    %c0_5 = arith.constant 0 : index
    %c0_6 = arith.constant 0 : index
    %6 = vector.load %arg4[%c0_5, %c0_6] : memref<8x128xf32, #tpu.memory_space<vmem>>, vector<8x128xf32>
    tpu.vector_store %arg4[%c0_5, %c0_6], %5 {strides = array<i32>} : memref<8x128xf32, #tpu.memory_space<vmem>>, vector<8x128xf32>,
    return
  }
  func.func @transform_0(%arg0: i32) -> (i32, i32) {
    %c0_i32 = arith.constant 0 : i32
    %c0_i32_0 = arith.constant 0 : i32
    return %arg0, %c0_i32 : i32, i32
  }
  func.func @transform_1(%arg0: i32) -> (i32, i32) {
    %c0_i32 = arith.constant 0 : i32
    %c0_i32_0 = arith.constant 0 : i32
    %c0_i32_1 = arith.constant 0 : i32
    return %c0_i32, %c0_i32_0 : i32, i32
  }
  func.func @transform_2(%arg0: i32) -> (i32, i32) {
    %c0_i32 = arith.constant 0 : i32
    %c0_i32_0 = arith.constant 0 : i32
    %c0_i32_1 = arith.constant 0 : i32
    return %c0_i32, %c0_i32_0 : i32, i32
  }
  func.func @transform_3(%arg0: i32) -> (i32, i32) {
    %c0_i32 = arith.constant 0 : i32
    %c0_i32_0 = arith.constant 0 : i32
    return %arg0, %c0_i32 : i32, i32
  }
}

</mosaic_0001>

<llo_original>
// kernel: classification_head_forward.1
$region0: #{classification_head_forward.1}
  #allocation0 [shape = 'u32[]', space=smem, size = 0x4, offset = 0x4, fixed_abs, tag = 'smem constant byte address 0x4 - core index']
  #allocation1 [shape = 'u32[72,128]{1,0:T(1,128)}', space=vmem, size = 0x9000, scoped, tag = 'internal scratch']
  %s0 = inlined_call_operand.vmem [shape: bf16[8,128], index: 0, kind: input, shape index: {}]
  %s1 = inlined_call_operand.hbm [shape: bf16[128,128], index: 1, kind: input, shape index: {}]
  %s2 = inlined_call_operand.vmem [shape: f32[1,128], index: 2, kind: input, shape index: {}]
  %s3 = inlined_call_operand.vmem [shape: f32[8,128], index: 3, kind: output, shape index: {}]
  %s4 = sld [smem:[#allocation0]]
  $region26: #{classification_head_forward.1} parent=0
    _
  %s6 = ssub.s32 1, %s4
  %s7 = scalar_select 0, %s6, %s4
  $region1: #{classification_head_forward.1} parent=0
    #allocation2 [shape = 'u8[32768]{0}', space=vmem, size = 0x8000, scoped, tag = 'input window, operand 1, single buffered']
    #allocation3 [shape = 's32[1]{0}', space=sflag, size = 0x4, scoped, tag = 'scoped memory for classification_head_forward.1']
    %8 = vsyncpa [#allocation3], 0
    // Predicated region
    $region2: #{classification_head_forward.1} parent=1 // pred_check
      _
    $region3: #{classification_head_forward.1} parent=1 // pred_check_branch
      %10 = sbr.rel (0) target = $region5
    $region4: #{classification_head_forward.1} parent=1 // pred_region
      _
    $region5: #{classification_head_forward.1} parent=1 // pred_fallthru
      _
    // Predicated region
    $region6: #{classification_head_forward.1} parent=1 // pred_check
      _
    $region7: #{classification_head_forward.1} parent=1 // pred_check_branch
      %12 = sbr.rel (0) target = $region9
    $region8: #{classification_head_forward.1} parent=1 // pred_region
      %14 = vsyncadd [#allocation3], 0
      %s15 = sshll.u32 %s1, 4
      %s16 = int_to_ptr.hbm [resolvable:$true] %s15
      %s17 = sshll.u32 [#allocation2], 4
      %s18 = int_to_ptr.vmem [resolvable:$true] %s17
      %23 = dma.hbm_to_vmem [thread:$0]  %s16, 1024, %s18, [#allocation3], 64, 64, 4
    $region9: #{classification_head_forward.1} parent=1 // pred_fallthru
      _
    // Predicated region
    $region10: #{classification_head_forward.1} parent=1 // pred_check
      _
    $region11: #{classification_head_forward.1} parent=1 // pred_check_branch
      %25 = sbr.rel (0) target = $region13
    $region12: #{classification_head_forward.1} parent=1 // pred_region
      _
    $region13: #{classification_head_forward.1} parent=1 // pred_fallthru
      _
    // Predicated region
    $region14: #{classification_head_forward.1} parent=1 // pred_check
      _
    $region15: #{classification_head_forward.1} parent=1 // pred_check_branch
      %27 = sbr.rel (0) target = $region17
    $region16: #{classification_head_forward.1} parent=1 // pred_region
      %29 = dma.done [#allocation3], 1024
    $region17: #{classification_head_forward.1} parent=1 // pred_fallthru
      _
    %v30 = vld [vmem:[%s0] sm:$0xf]
    %v31 = vld [vmem:[#allocation2] sm:$0xf]
    %v32 = vld [vmem:[#allocation2 + $0x4] sm:$0xf]
    %v33 = vld [vmem:[#allocation2 + $0x8] sm:$0xf]
    %v34 = vld [vmem:[#allocation2 + $0xc] sm:$0xf]
    %v35 = vld [vmem:[#allocation2 + $0x10] sm:$0xf]
    %v36 = vld [vmem:[#allocation2 + $0x14] sm:$0xf]
    %v37 = vld [vmem:[#allocation2 + $0x18] sm:$0xf]
    %v38 = vld [vmem:[#allocation2 + $0x1c] sm:$0xf]
    %v39 = vld [vmem:[#allocation2 + $0x20] sm:$0xf]
    %v40 = vld [vmem:[#allocation2 + $0x24] sm:$0xf]
    %v41 = vld [vmem:[#allocation2 + $0x28] sm:$0xf]
    %v42 = vld [vmem:[#allocation2 + $0x2c] sm:$0xf]
    %v43 = vld [vmem:[#allocation2 + $0x30] sm:$0xf]
    %v44 = vld [vmem:[#allocation2 + $0x34] sm:$0xf]
    %v45 = vld [vmem:[#allocation2 + $0x38] sm:$0xf]
    %v46 = vld [vmem:[#allocation2 + $0x3c] sm:$0xf]
    %v47 = vld [vmem:[%s2] sm:$0x1]
    %v49 = vperm.slane %v47, 0
    %v67 = vunpack.c.l.b16 %v31
    %v68 = vunpack.c.l.b16 %v32
    %v69 = vunpack.c.l.b16 %v33
    %v70 = vunpack.c.l.b16 %v34
    %v71 = vunpack.c.l.b16 %v35
    %v72 = vunpack.c.l.b16 %v36
    %v73 = vunpack.c.l.b16 %v37
    %v74 = vunpack.c.l.b16 %v38
    %v75 = vunpack.c.l.b16 %v39
    %v76 = vunpack.c.l.b16 %v40
    %v77 = vunpack.c.l.b16 %v41
    %v78 = vunpack.c.l.b16 %v42
    %v79 = vunpack.c.l.b16 %v43
    %v80 = vunpack.c.l.b16 %v44
    %v81 = vunpack.c.l.b16 %v45
    %v82 = vunpack.c.l.b16 %v46
    %v83 = vpack.c.b16 %v68, %v67
    %v84 = vpack.c.b16 %v70, %v69
    %v85 = vpack.c.b16 %v72, %v71
    %v86 = vpack.c.b16 %v74, %v73
    %v87 = vpack.c.b16 %v76, %v75
    %v88 = vpack.c.b16 %v78, %v77
    %v89 = vpack.c.b16 %v80, %v79
    %v90 = vpack.c.b16 %v82, %v81
    %99 = vmatpush.bf16.msra.mxu0 %v90
    %100 = vmatpush.bf16.msra.mxu0 %v89
    %101 = vmatpush.bf16.msra.mxu0 %v88
    %102 = vmatpush.bf16.msra.mxu0 %v87
    %103 = vmatpush.bf16.msra.mxu0 %v86
    %104 = vmatpush.bf16.msra.mxu0 %v85
    %105 = vmatpush.bf16.msra.mxu0 %v84
    %106 = vmatpush.bf16.msra.mxu0 %v83
    %107 = vmatmul.bf16.gmra.mxu0 %v30
    %v108 = vpop.f32.mrf.mxu0
    %v109 = vadd.f32 %v49, %v108
    %v110 = vpop.f32.mrf.mxu0
    %111 = vdwg.mxu0
    %112 = vst [vmem:[%s3] sm:$0xff] %v109
    // Predicated region
    $region18: #{classification_head_forward.1} parent=1 // pred_check
      _
    $region19: #{classification_head_forward.1} parent=1 // pred_check_branch
      %114 = sbr.rel (0) target = $region21
    $region20: #{classification_head_forward.1} parent=1 // pred_region
      _
    $region21: #{classification_head_forward.1} parent=1 // pred_fallthru
      _
    // Predicated region
    $region22: #{classification_head_forward.1} parent=1 // pred_check
      _
    $region23: #{classification_head_forward.1} parent=1 // pred_check_branch
      %116 = sbr.rel (0) target = $region25
    $region24: #{classification_head_forward.1} parent=1 // pred_region
      _
    $region25: #{classification_head_forward.1} parent=1 // pred_fallthru
      _
    %117 = vsyncpa [#allocation3], 1

</llo_original>
